<compile_context>
chip_gen: v5e
topology: v5e:2x2
jax: 0.10.0
libtpu: 0.0.40
codegen_flags: <defaults>
</compile_context>

<pallas_src>
import jax
import jax.numpy as jnp
from jax.experimental import pallas as pl
from jax.experimental.pallas import tpu as pltpu

_CH3 = 1024   # conv3 output channels
_SLAB = 256   # conv3 output-column slab width (fills v6e/v7x MXU output dim)


def _stn3d_feat_kernel(x_ref, w1_ref, b1_ref, w2_ref, b2_ref, w3_ref, o_ref):
    t = pl.program_id(2)                     # sequential point-tile axis
    Bb, tile_n, _ = x_ref.shape
    M = Bb * tile_n

    # Fold batch into the matmul M dimension.
    x = x_ref[...].reshape(M, 3)             # f32

    # conv1: in_ch=3 would waste ~125/128 of the MXU contraction dim,
    # so do it as 3 VPU broadcast FMAs (frees the MXU for conv2/conv3).
    w1 = w1_ref[...]                          # (3, 64) f32
    h1 = (x[:, 0:1] * w1[0:1, :]
          + x[:, 1:2] * w1[1:2, :]
          + x[:, 2:3] * w1[2:3, :]
          + b1_ref[...])
    h1 = jnp.maximum(h1, 0.0)                 # (M, 64) f32

    # conv2: bf16 MXU matmul, f32 accumulation, bias + ReLU in f32.
    h2 = jnp.dot(h1.astype(jnp.bfloat16), w2_ref[...],
                 preferred_element_type=jnp.float32) + b2_ref[...]
    h2 = jnp.maximum(h2, 0.0)                 # (M, 128) f32
    h2_bf = h2.astype(jnp.bfloat16)

    # conv3 in 256-wide output slabs with immediate per-batch max reduction so
    # the live f32 conv3 activation is only (M, 256).  The +b3 and ReLU are
    # hoisted past the pool into the wrapper (they commute with max).
    for c in range(0, _CH3, _SLAB):
        h3c = jnp.dot(h2_bf, w3_ref[:, c:c + _SLAB],
                      preferred_element_type=jnp.float32)      # (M, SLAB) f32
        mc = jnp.max(h3c.reshape(Bb, tile_n, _SLAB), axis=1)   # (Bb, SLAB)

        @pl.when(t == 0)
        def _(mc=mc, c=c):
            o_ref[0, :, c:c + _SLAB] = mc

        @pl.when(t != 0)
        def _(mc=mc, c=c):
            o_ref[0, :, c:c + _SLAB] = jnp.maximum(
                o_ref[0, :, c:c + _SLAB], mc)


def _pick_batch_block(B, max_rows):
    """Batch block that (a) divides B or equals B, (b) is a multiple of 8 or
    equals B (layout rule for the pooled-output block's second-last dim), and
    (c) leaves room for at least an 8-point tile (B_blk * 8 <= max_rows)."""
    cap = max(1, max_rows // 8)
    if B <= cap:
        return B
    bb = (cap // 8) * 8
    while bb >= 8 and B % bb != 0:
        bb -= 8
    return bb if bb >= 8 else B   # rare fallback: no multiple-of-8 divisor


def _pick_point_tile(N, B_blk, max_rows):
    """Point tile: multiple of 8 dividing N, with B_blk * tile_n <= max_rows;
    full extent for ragged N."""
    if N % 8 != 0:
        return N
    budget = max(8, (max_rows // B_blk) // 8 * 8)
    tile = min(N, budget)
    while N % tile != 0:
        tile -= 8
    return tile


def init_params(key):
    """Deterministic synthetic parameters (PyTorch-default-style uniform init,
    with the special zero / 1.5 initializations from STN3d.__init__)."""
    def uniform(k, shape, fan_in):
        bound = 1.0 / float(fan_in) ** 0.5
        return jax.random.uniform(k, shape, jnp.float32, -bound, bound)

    ks = jax.random.split(key, 12)
    W1 = uniform(ks[0], (3, 64), 3);        b1 = uniform(ks[1], (1, 64), 3)
    W2 = uniform(ks[2], (64, 128), 64);     b2 = uniform(ks[3], (1, 128), 64)
    W3 = uniform(ks[4], (128, 1024), 128);  b3 = uniform(ks[5], (1, 1024), 128)
    W4 = uniform(ks[6], (1024, 512), 1024); b4 = uniform(ks[7], (1, 512), 1024)
    W5 = uniform(ks[8], (512, 256), 512);   b5 = uniform(ks[9], (1, 256), 512)
    # fcrot: weight & bias zeroed in __init__
    Wrot = jnp.zeros((256, 1), jnp.float32)
    brot = jnp.zeros((1, 1), jnp.float32)
    # fctrans: default init
    Wtrans = uniform(ks[10], (256, 2), 256)
    btrans = uniform(ks[11], (1, 2), 256)
    # fcscale: weight zero, bias = 1.5
    Wscale = jnp.zeros((256, 1), jnp.float32)
    bscale = jnp.full((1, 1), 1.5, jnp.float32)
    return (W1, b1, W2, b2, W3, b3, W4, b4, W5, b5,
            Wrot, brot, Wtrans, btrans, Wscale, bscale)


def _fc_head(feat, W4, b4, W5, b5, Wrot, brot, Wtrans, btrans, Wscale, bscale):
    """Tiny FC head (1024->512->256->{rot,trans,scale}) + transform assembly.
    Plain JAX: keeps ~5 MiB of weights out of VMEM; mirrors PyTorch exactly,
    including the ReLU on xrot and xtrans[:, 0] written into BOTH rows."""
    h4 = jax.nn.relu(jnp.dot(feat, W4) + b4)                    # (B, 512)
    h5 = jax.nn.relu(jnp.dot(h4, W5) + b5)                      # (B, 256)
    xrot = jax.nn.relu(jnp.dot(h5, Wrot) + brot)                # (B, 1)
    xscale = jnp.dot(h5, Wscale) + bscale                       # (B, 1)
    xtrans = jnp.dot(h5, Wtrans) + btrans                       # (B, 2)

    ang = xrot[:, 0]
    c = jnp.cos(ang)
    s = jnp.sin(ang)
    inv = 1.0 / xscale[:, 0]
    t0 = xtrans[:, 0]          # PyTorch writes xtrans[:, 0] into BOTH rows
    zeros = jnp.zeros_like(c)
    ones = jnp.ones_like(c)
    row0 = jnp.stack([c * inv, s * inv, t0], axis=-1)
    row1 = jnp.stack([-s * inv, c * inv, t0], axis=-1)
    row2 = jnp.stack([zeros, zeros, ones], axis=-1)
    tmat = jnp.stack([row0, row1, row2], axis=1)                # (B, 3, 3)
    return tmat, xrot, xscale, xtrans


def stn3d_forward(x, params, *, max_rows=4096):
    """x: (B, 3, N) float32 (PyTorch NCW). Returns (tmat, xrot, xscale, xtrans)."""
    (W1, b1, W2, b2, W3, b3, W4, b4, W5, b5,
     Wrot, brot, Wtrans, btrans, Wscale, bscale) = params

    B, C, N = x.shape
    assert C == 3
    x_pts = jnp.transpose(x, (0, 2, 1)).astype(jnp.float32)     # (B, N, 3)

    # --- blocking: bound M = B_blk * tile_n <= max_rows for any B, N.
    B_blk = _pick_batch_block(B, max_rows)
    tile_n = _pick_point_tile(N, B_blk, max_rows)
    n_tiles = N // tile_n
    n_bblocks = B // B_blk

    # Leading "parallel" half-split over point tiles (v7x's 2 TensorCores).
    # Guaranteed size 2 whenever >= 2 tiles exist: odd tile counts are padded
    # and the index map clamps to the last tile (max is idempotent).
    if n_tiles >= 2:
        n_halves, tiles_per_half = 2, (n_tiles + 1) // 2
    else:
        n_halves, tiles_per_half = 1, 1
    last_tile = n_tiles - 1
    padded = (n_halves * tiles_per_half != n_tiles)

    if padded:
        def x_index(p, bb, t):
            return (bb, jnp.minimum(p * tiles_per_half + t, last_tile), 0)
    else:
        def x_index(p, bb, t):
            return (bb, p * tiles_per_half + t, 0)

    w2_bf = W2.astype(jnp.bfloat16)
    w3_bf = W3.astype(jnp.bfloat16)

    x_spec = pl.BlockSpec((B_blk, tile_n, 3), x_index)

    def full(a):
        return pl.BlockSpec(a.shape, lambda p, bb, t: (0,) * a.ndim)

    raw = pl.pallas_call(
        _stn3d_feat_kernel,
        out_shape=jax.ShapeDtypeStruct((n_halves, B, 1024), jnp.float32),
        grid=(n_halves, n_bblocks, tiles_per_half),
        in_specs=[x_spec,
                  full(W1), full(b1),
                  full(w2_bf), full(b2),
                  full(w3_bf)],
        out_specs=pl.BlockSpec((1, B_blk, 1024), lambda p, bb, t: (p, bb, 0)),
        compiler_params=pltpu.CompilerParams(
            dimension_semantics=("parallel", "parallel", "arbitrary"),
            vmem_limit_bytes=32 * 1024 * 1024),
    )(x_pts, W1, b1, w2_bf, b2, w3_bf)

    # Hoisted conv3 bias + ReLU (commute with the point-wise max-pool).
    feat = jax.nn.relu(jnp.max(raw, axis=0) + b3)                # (B, 1024)

    return _fc_head(feat, W4, b4, W5, b5,
                    Wrot, brot, Wtrans, btrans, Wscale, bscale)


def stn3d_reference(x, params):
    """Pure-JAX f32 reference matching the PyTorch forward (for validation)."""
    (W1, b1, W2, b2, W3, b3, W4, b4, W5, b5,
     Wrot, brot, Wtrans, btrans, Wscale, bscale) = params
    xp = jnp.transpose(x, (0, 2, 1)).astype(jnp.float32)         # (B, N, 3)
    h1 = jax.nn.relu(jnp.einsum('bnc,cd->bnd', xp, W1) + b1)
    h2 = jax.nn.relu(jnp.einsum('bnc,cd->bnd', h1, W2) + b2)
    h3 = jax.nn.relu(jnp.einsum('bnc,cd->bnd', h2, W3) + b3)
    feat = jnp.max(h3, axis=1)                                   # (B, 1024)
    return _fc_head(feat, W4, b4, W5, b5,
                    Wrot, brot, Wtrans, btrans, Wscale, bscale)


if __name__ == "__main__":
    key = jax.random.PRNGKey(0)
    kx, kp = jax.random.split(key)
    B, N = 2, 16
    x = jax.random.normal(kx, (B, 3, N), jnp.float32)
    params = init_params(kp)

    out = jax.jit(stn3d_forward)(x, params)
    jax.block_until_ready(out)

    # Loose tolerance: conv2/conv3 run in bf16 with f32 accumulation.
    ref = stn3d_reference(x, params)
    for got, want in zip(out, ref):
        assert jnp.allclose(got, want, rtol=5e-2, atol=5e-2)

    print("KERNEL_OK")
</pallas_src>

<mosaic_0001>
module attributes {stable_mosaic.version = 11 : i64} {
  func.func @_stn3d_feat_kernel(%arg0: i32, %arg1: i32, %arg2: i32, %arg3: memref<2x16x3xf32, #tpu.memory_space<vmem>>, %arg4: memref<3x64xf32, #tpu.memory_space<vmem>>, %arg5: memref<1x64xf32, #tpu.memory_space<vmem>>, %arg6: memref<64x128xbf16, #tpu.memory_space<vmem>>, %arg7: memref<1x128xf32, #tpu.memory_space<vmem>>, %arg8: memref<128x1024xbf16, #tpu.memory_space<vmem>>, %arg9: memref<1x2x1024xf32, #tpu.memory_space<vmem>>) attributes {dimension_semantics = [#tpu.dimension_semantics<parallel>, #tpu.dimension_semantics<parallel>, #tpu.dimension_semantics<arbitrary>], iteration_bounds = array<i64: 1, 1, 1>, scalar_prefetch = 0 : i64, scratch_operands = 0 : i64, tpu.core_type = #tpu.core_type<tc>, window_params = [{transform_indices = @transform_0, window_bounds = array<i64: 2, 16, 3>}, {pipeline_mode = #tpu.pipeline_mode<synchronous>, transform_indices = @transform_1, window_bounds = array<i64: 3, 64>}, {pipeline_mode = #tpu.pipeline_mode<synchronous>, transform_indices = @transform_2, window_bounds = array<i64: 1, 64>}, {pipeline_mode = #tpu.pipeline_mode<synchronous>, transform_indices = @transform_3, window_bounds = array<i64: 64, 128>}, {pipeline_mode = #tpu.pipeline_mode<synchronous>, transform_indices = @transform_4, window_bounds = array<i64: 1, 128>}, {pipeline_mode = #tpu.pipeline_mode<synchronous>, transform_indices = @transform_5, window_bounds = array<i64: 128, 1024>}, {transform_indices = @transform_6, window_bounds = array<i64: 1, 2, 1024>}]} {
    %c0 = arith.constant 0 : index
    %c0_0 = arith.constant 0 : index
    %c0_1 = arith.constant 0 : index
    %0 = vector.load %arg3[%c0, %c0_0, %c0_1] : memref<2x16x3xf32, #tpu.memory_space<vmem>>, vector<2x16x3xf32>
    %1 = vector.shape_cast %0 : vector<2x16x3xf32> to vector<32x3xf32>
    %c0_2 = arith.constant 0 : index
    %c0_3 = arith.constant 0 : index
    %2 = vector.load %arg4[%c0_2, %c0_3] : memref<3x64xf32, #tpu.memory_space<vmem>>, vector<3x64xf32>
    %3 = vector.extract_strided_slice %1 {offsets = [0, 0], sizes = [32, 1], strides = [1, 1]} : vector<32x3xf32> to vector<32x1xf32>
    %4 = vector.extract_strided_slice %2 {offsets = [0, 0], sizes = [1, 64], strides = [1, 1]} : vector<3x64xf32> to vector<1x64xf32>
    %5 = vector.broadcast %3 : vector<32x1xf32> to vector<32x64xf32>
    %6 = vector.broadcast %4 : vector<1x64xf32> to vector<32x64xf32>
    %7 = arith.mulf %5, %6 : vector<32x64xf32>
    %8 = vector.extract_strided_slice %1 {offsets = [0, 1], sizes = [32, 1], strides = [1, 1]} : vector<32x3xf32> to vector<32x1xf32>
    %9 = vector.extract_strided_slice %2 {offsets = [1, 0], sizes = [1, 64], strides = [1, 1]} : vector<3x64xf32> to vector<1x64xf32>
    %10 = vector.broadcast %8 : vector<32x1xf32> to vector<32x64xf32>
    %11 = vector.broadcast %9 : vector<1x64xf32> to vector<32x64xf32>
    %12 = arith.mulf %10, %11 : vector<32x64xf32>
    %13 = arith.addf %7, %12 : vector<32x64xf32>
    %14 = vector.extract_strided_slice %1 {offsets = [0, 2], sizes = [32, 1], strides = [1, 1]} : vector<32x3xf32> to vector<32x1xf32>
    %15 = vector.extract_strided_slice %2 {offsets = [2, 0], sizes = [1, 64], strides = [1, 1]} : vector<3x64xf32> to vector<1x64xf32>
    %16 = vector.broadcast %14 : vector<32x1xf32> to vector<32x64xf32>
    %17 = vector.broadcast %15 : vector<1x64xf32> to vector<32x64xf32>
    %18 = arith.mulf %16, %17 : vector<32x64xf32>
    %19 = arith.addf %13, %18 : vector<32x64xf32>
    %c0_4 = arith.constant 0 : index
    %c0_5 = arith.constant 0 : index
    %20 = vector.load %arg5[%c0_4, %c0_5] : memref<1x64xf32, #tpu.memory_space<vmem>>, vector<1x64xf32>
    %21 = vector.broadcast %20 : vector<1x64xf32> to vector<32x64xf32>
    %22 = arith.addf %19, %21 : vector<32x64xf32>
    %cst = arith.constant 0.000000e+00 : f32
    %23 = vector.broadcast %cst : f32 to vector<32x64xf32>
    %24 = arith.maximumf %22, %23 : vector<32x64xf32>
    %25 = arith.truncf %24 : vector<32x64xf32> to vector<32x64xbf16>
    %c0_6 = arith.constant 0 : index
    %c0_7 = arith.constant 0 : index
    %26 = vector.load %arg6[%c0_6, %c0_7] : memref<64x128xbf16, #tpu.memory_space<vmem>>, vector<64x128xbf16>
    %cst_8 = arith.constant dense<0.000000e+00> : vector<32x128xf32>
    %27 = tpu.matmul %25, %26, %cst_8 {dimension_numbers = #tpu.dot_dimension_numbers<[1], [0], [0], [1], [0, 0, 1, 1], [], []>} : vector<32x64xbf16>, vector<64x128xbf16>, vector<32x128xf32> -> vector<32x128xf32>
    %c0_9 = arith.constant 0 : index
    %c0_10 = arith.constant 0 : index
    %28 = vector.load %arg7[%c0_9, %c0_10] : memref<1x128xf32, #tpu.memory_space<vmem>>, vector<1x128xf32>
    %29 = vector.broadcast %28 : vector<1x128xf32> to vector<32x128xf32>
    %30 = arith.addf %27, %29 : vector<32x128xf32>
    %cst_11 = arith.constant 0.000000e+00 : f32
    %31 = vector.broadcast %cst_11 : f32 to vector<32x128xf32>
    %32 = arith.maximumf %30, %31 : vector<32x128xf32>
    %33 = arith.truncf %32 : vector<32x128xf32> to vector<32x128xbf16>
    %c0_12 = arith.constant 0 : index
    %c0_13 = arith.constant 0 : index
    %34 = vector.load %arg8[%c0_12, %c0_13] : memref<128x1024xbf16, #tpu.memory_space<vmem>>, vector<128x256xbf16>
    %cst_14 = arith.constant dense<0.000000e+00> : vector<32x256xf32>
    %35 = tpu.matmul %33, %34, %cst_14 {dimension_numbers = #tpu.dot_dimension_numbers<[1], [0], [0], [1], [0, 0, 1, 1], [], []>} : vector<32x128xbf16>, vector<128x256xbf16>, vector<32x256xf32> -> vector<32x256xf32>
    %36 = vector.shape_cast %35 : vector<32x256xf32> to vector<2x16x256xf32>
    %cst_15 = arith.constant dense<0xFF800000> : vector<2x256xf32>
    %37 = vector.multi_reduction <maximumf>, %36, %cst_15 [1] : vector<2x16x256xf32> to vector<2x256xf32>
    %c0_i32 = arith.constant 0 : i32
    %38 = arith.cmpi eq, %arg2, %c0_i32 : i32
    %39 = arith.extui %38 : i1 to i32
    %c0_i32_16 = arith.constant 0 : i32
    %40 = arith.cmpi ne, %39, %c0_i32_16 : i32
    scf.if %40 {
      %c0_40 = arith.constant 0 : index
      %c0_41 = arith.constant 0 : index
      %c0_42 = arith.constant 0 : index
      %74 = vector.load %arg9[%c0_40, %c0_41, %c0_42] : memref<1x2x1024xf32, #tpu.memory_space<vmem>>, vector<1x2x256xf32>
      %75 = vector.shape_cast %74 : vector<1x2x256xf32> to vector<2x256xf32>
      %76 = vector.shape_cast %37 : vector<2x256xf32> to vector<1x2x256xf32>
      tpu.vector_store %arg9[%c0_40, %c0_41, %c0_42], %76 {strides = array<i32>} : memref<1x2x1024xf32, #tpu.memory_space<vmem>>, vector<1x2x256xf32>,
    } else {
    }
    %c0_i32_17 = arith.constant 0 : i32
    %41 = arith.cmpi ne, %arg2, %c0_i32_17 : i32
    %42 = arith.extui %41 : i1 to i32
    %c0_i32_18 = arith.constant 0 : i32
    %43 = arith.cmpi ne, %42, %c0_i32_18 : i32
    scf.if %43 {
      %c0_40 = arith.constant 0 : index
      %c0_41 = arith.constant 0 : index
      %c0_42 = arith.constant 0 : index
      %74 = vector.load %arg9[%c0_40, %c0_41, %c0_42] : memref<1x2x1024xf32, #tpu.memory_space<vmem>>, vector<1x2x256xf32>
      %75 = vector.shape_cast %74 : vector<1x2x256xf32> to vector<2x256xf32>
      %76 = arith.maximumf %75, %37 : vector<2x256xf32>
      %c0_43 = arith.constant 0 : index
      %c0_44 = arith.constant 0 : index
      %c0_45 = arith.constant 0 : index
      %77 = vector.load %arg9[%c0_43, %c0_44, %c0_45] : memref<1x2x1024xf32, #tpu.memory_space<vmem>>, vector<1x2x256xf32>
      %78 = vector.shape_cast %77 : vector<1x2x256xf32> to vector<2x256xf32>
      %79 = vector.shape_cast %76 : vector<2x256xf32> to vector<1x2x256xf32>
      tpu.vector_store %arg9[%c0_43, %c0_44, %c0_45], %79 {strides = array<i32>} : memref<1x2x1024xf32, #tpu.memory_space<vmem>>, vector<1x2x256xf32>,
    } else {
    }
    %c0_19 = arith.constant 0 : index
    %c256 = arith.constant 256 : index
    %44 = vector.load %arg8[%c0_19, %c256] : memref<128x1024xbf16, #tpu.memory_space<vmem>>, vector<128x256xbf16>
    %cst_20 = arith.constant dense<0.000000e+00> : vector<32x256xf32>
    %45 = tpu.matmul %33, %44, %cst_20 {dimension_numbers = #tpu.dot_dimension_numbers<[1], [0], [0], [1], [0, 0, 1, 1], [], []>} : vector<32x128xbf16>, vector<128x256xbf16>, vector<32x256xf32> -> vector<32x256xf32>
    %46 = vector.shape_cast %45 : vector<32x256xf32> to vector<2x16x256xf32>
    %cst_21 = arith.constant dense<0xFF800000> : vector<2x256xf32>
    %47 = vector.multi_reduction <maximumf>, %46, %cst_21 [1] : vector<2x16x256xf32> to vector<2x256xf32>
    %c0_i32_22 = arith.constant 0 : i32
    %48 = arith.cmpi eq, %arg2, %c0_i32_22 : i32
    %49 = arith.extui %48 : i1 to i32
    %c0_i32_23 = arith.constant 0 : i32
    %50 = arith.cmpi ne, %49, %c0_i32_23 : i32
    scf.if %50 {
      %c0_40 = arith.constant 0 : index
      %c0_41 = arith.constant 0 : index
      %c256_42 = arith.constant 256 : index
      %74 = vector.load %arg9[%c0_40, %c0_41, %c256_42] : memref<1x2x1024xf32, #tpu.memory_space<vmem>>, vector<1x2x256xf32>
      %75 = vector.shape_cast %74 : vector<1x2x256xf32> to vector<2x256xf32>
      %76 = vector.shape_cast %47 : vector<2x256xf32> to vector<1x2x256xf32>
      tpu.vector_store %arg9[%c0_40, %c0_41, %c256_42], %76 {strides = array<i32>} : memref<1x2x1024xf32, #tpu.memory_space<vmem>>, vector<1x2x256xf32>,
    } else {
    }
    %c0_i32_24 = arith.constant 0 : i32
    %51 = arith.cmpi ne, %arg2, %c0_i32_24 : i32
    %52 = arith.extui %51 : i1 to i32
    %c0_i32_25 = arith.constant 0 : i32
    %53 = arith.cmpi ne, %52, %c0_i32_25 : i32
    scf.if %53 {
      %c0_40 = arith.constant 0 : index
      %c0_41 = arith.constant 0 : index
      %c256_42 = arith.constant 256 : index
      %74 = vector.load %arg9[%c0_40, %c0_41, %c256_42] : memref<1x2x1024xf32, #tpu.memory_space<vmem>>, vector<1x2x256xf32>
      %75 = vector.shape_cast %74 : vector<1x2x256xf32> to vector<2x256xf32>
      %76 = arith.maximumf %75, %47 : vector<2x256xf32>
      %c0_43 = arith.constant 0 : index
      %c0_44 = arith.constant 0 : index
      %c256_45 = arith.constant 256 : index
      %77 = vector.load %arg9[%c0_43, %c0_44, %c256_45] : memref<1x2x1024xf32, #tpu.memory_space<vmem>>, vector<1x2x256xf32>
      %78 = vector.shape_cast %77 : vector<1x2x256xf32> to vector<2x256xf32>
      %79 = vector.shape_cast %76 : vector<2x256xf32> to vector<1x2x256xf32>
      tpu.vector_store %arg9[%c0_43, %c0_44, %c256_45], %79 {strides = array<i32>} : memref<1x2x1024xf32, #tpu.memory_space<vmem>>, vector<1x2x256xf32>,
    } else {
    }
    %c0_26 = arith.constant 0 : index
    %c512 = arith.constant 512 : index
    %54 = vector.load %arg8[%c0_26, %c512] : memref<128x1024xbf16, #tpu.memory_space<vmem>>, vector<128x256xbf16>
    %cst_27 = arith.constant dense<0.000000e+00> : vector<32x256xf32>
    %55 = tpu.matmul %33, %54, %cst_27 {dimension_numbers = #tpu.dot_dimension_numbers<[1], [0], [0], [1], [0, 0, 1, 1], [], []>} : vector<32x128xbf16>, vector<128x256xbf16>, vector<32x256xf32> -> vector<32x256xf32>
    %56 = vector.shape_cast %55 : vector<32x256xf32> to vector<2x16x256xf32>
    %cst_28 = arith.constant dense<0xFF800000> : vector<2x256xf32>
    %57 = vector.multi_reduction <maximumf>, %56, %cst_28 [1] : vector<2x16x256xf32> to vector<2x256xf32>
    %c0_i32_29 = arith.constant 0 : i32
    %58 = arith.cmpi eq, %arg2, %c0_i32_29 : i32
    %59 = arith.extui %58 : i1 to i32
    %c0_i32_30 = arith.constant 0 : i32
    %60 = arith.cmpi ne, %59, %c0_i32_30 : i32
    scf.if %60 {
      %c0_40 = arith.constant 0 : index
      %c0_41 = arith.constant 0 : index
      %c512_42 = arith.constant 512 : index
      %74 = vector.load %arg9[%c0_40, %c0_41, %c512_42] : memref<1x2x1024xf32, #tpu.memory_space<vmem>>, vector<1x2x256xf32>
      %75 = vector.shape_cast %74 : vector<1x2x256xf32> to vector<2x256xf32>
      %76 = vector.shape_cast %57 : vector<2x256xf32> to vector<1x2x256xf32>
      tpu.vector_store %arg9[%c0_40, %c0_41, %c512_42], %76 {strides = array<i32>} : memref<1x2x1024xf32, #tpu.memory_space<vmem>>, vector<1x2x256xf32>,
    } else {
    }
    %c0_i32_31 = arith.constant 0 : i32
    %61 = arith.cmpi ne, %arg2, %c0_i32_31 : i32
    %62 = arith.extui %61 : i1 to i32
    %c0_i32_32 = arith.constant 0 : i32
    %63 = arith.cmpi ne, %62, %c0_i32_32 : i32
    scf.if %63 {
      %c0_40 = arith.constant 0 : index
      %c0_41 = arith.constant 0 : index
      %c512_42 = arith.constant 512 : index
      %74 = vector.load %arg9[%c0_40, %c0_41, %c512_42] : memref<1x2x1024xf32, #tpu.memory_space<vmem>>, vector<1x2x256xf32>
      %75 = vector.shape_cast %74 : vector<1x2x256xf32> to vector<2x256xf32>
      %76 = arith.maximumf %75, %57 : vector<2x256xf32>
      %c0_43 = arith.constant 0 : index
      %c0_44 = arith.constant 0 : index
      %c512_45 = arith.constant 512 : index
      %77 = vector.load %arg9[%c0_43, %c0_44, %c512_45] : memref<1x2x1024xf32, #tpu.memory_space<vmem>>, vector<1x2x256xf32>
      %78 = vector.shape_cast %77 : vector<1x2x256xf32> to vector<2x256xf32>
      %79 = vector.shape_cast %76 : vector<2x256xf32> to vector<1x2x256xf32>
      tpu.vector_store %arg9[%c0_43, %c0_44, %c512_45], %79 {strides = array<i32>} : memref<1x2x1024xf32, #tpu.memory_space<vmem>>, vector<1x2x256xf32>,
    } else {
    }
    %c0_33 = arith.constant 0 : index
    %c768 = arith.constant 768 : index
    %64 = vector.load %arg8[%c0_33, %c768] : memref<128x1024xbf16, #tpu.memory_space<vmem>>, vector<128x256xbf16>
    %cst_34 = arith.constant dense<0.000000e+00> : vector<32x256xf32>
    %65 = tpu.matmul %33, %64, %cst_34 {dimension_numbers = #tpu.dot_dimension_numbers<[1], [0], [0], [1], [0, 0, 1, 1], [], []>} : vector<32x128xbf16>, vector<128x256xbf16>, vector<32x256xf32> -> vector<32x256xf32>
    %66 = vector.shape_cast %65 : vector<32x256xf32> to vector<2x16x256xf32>
    %cst_35 = arith.constant dense<0xFF800000> : vector<2x256xf32>
    %67 = vector.multi_reduction <maximumf>, %66, %cst_35 [1] : vector<2x16x256xf32> to vector<2x256xf32>
    %c0_i32_36 = arith.constant 0 : i32
    %68 = arith.cmpi eq, %arg2, %c0_i32_36 : i32
    %69 = arith.extui %68 : i1 to i32
    %c0_i32_37 = arith.constant 0 : i32
    %70 = arith.cmpi ne, %69, %c0_i32_37 : i32
    scf.if %70 {
      %c0_40 = arith.constant 0 : index
      %c0_41 = arith.constant 0 : index
      %c768_42 = arith.constant 768 : index
      %74 = vector.load %arg9[%c0_40, %c0_41, %c768_42] : memref<1x2x1024xf32, #tpu.memory_space<vmem>>, vector<1x2x256xf32>
      %75 = vector.shape_cast %74 : vector<1x2x256xf32> to vector<2x256xf32>
      %76 = vector.shape_cast %67 : vector<2x256xf32> to vector<1x2x256xf32>
      tpu.vector_store %arg9[%c0_40, %c0_41, %c768_42], %76 {strides = array<i32>} : memref<1x2x1024xf32, #tpu.memory_space<vmem>>, vector<1x2x256xf32>,
    } else {
    }
    %c0_i32_38 = arith.constant 0 : i32
    %71 = arith.cmpi ne, %arg2, %c0_i32_38 : i32
    %72 = arith.extui %71 : i1 to i32
    %c0_i32_39 = arith.constant 0 : i32
    %73 = arith.cmpi ne, %72, %c0_i32_39 : i32
    scf.if %73 {
      %c0_40 = arith.constant 0 : index
      %c0_41 = arith.constant 0 : index
      %c768_42 = arith.constant 768 : index
      %74 = vector.load %arg9[%c0_40, %c0_41, %c768_42] : memref<1x2x1024xf32, #tpu.memory_space<vmem>>, vector<1x2x256xf32>
      %75 = vector.shape_cast %74 : vector<1x2x256xf32> to vector<2x256xf32>
      %76 = arith.maximumf %75, %67 : vector<2x256xf32>
      %c0_43 = arith.constant 0 : index
      %c0_44 = arith.constant 0 : index
      %c768_45 = arith.constant 768 : index
      %77 = vector.load %arg9[%c0_43, %c0_44, %c768_45] : memref<1x2x1024xf32, #tpu.memory_space<vmem>>, vector<1x2x256xf32>
      %78 = vector.shape_cast %77 : vector<1x2x256xf32> to vector<2x256xf32>
      %79 = vector.shape_cast %76 : vector<2x256xf32> to vector<1x2x256xf32>
      tpu.vector_store %arg9[%c0_43, %c0_44, %c768_45], %79 {strides = array<i32>} : memref<1x2x1024xf32, #tpu.memory_space<vmem>>, vector<1x2x256xf32>,
    } else {
    }
    return
  }
  func.func @transform_0(%arg0: i32, %arg1: i32, %arg2: i32) -> (i32, i32, i32) {
    %c1_i32 = arith.constant 1 : i32
    %0 = arith.muli %arg0, %c1_i32 : i32
    %1 = arith.addi %0, %arg2 : i32
    %c0_i32 = arith.constant 0 : i32
    %c0_i32_0 = arith.constant 0 : i32
    return %arg1, %1, %c0_i32 : i32, i32, i32
  }
  func.func @transform_1(%arg0: i32, %arg1: i32, %arg2: i32) -> (i32, i32) {
    %c0_i32 = arith.constant 0 : i32
    %c0_i32_0 = arith.constant 0 : i32
    %c0_i32_1 = arith.constant 0 : i32
    return %c0_i32, %c0_i32_0 : i32, i32
  }
  func.func @transform_2(%arg0: i32, %arg1: i32, %arg2: i32) -> (i32, i32) {
    %c0_i32 = arith.constant 0 : i32
    %c0_i32_0 = arith.constant 0 : i32
    %c0_i32_1 = arith.constant 0 : i32
    return %c0_i32, %c0_i32_0 : i32, i32
  }
  func.func @transform_3(%arg0: i32, %arg1: i32, %arg2: i32) -> (i32, i32) {
    %c0_i32 = arith.constant 0 : i32
    %c0_i32_0 = arith.constant 0 : i32
    %c0_i32_1 = arith.constant 0 : i32
    return %c0_i32, %c0_i32_0 : i32, i32
  }
  func.func @transform_4(%arg0: i32, %arg1: i32, %arg2: i32) -> (i32, i32) {
    %c0_i32 = arith.constant 0 : i32
    %c0_i32_0 = arith.constant 0 : i32
    %c0_i32_1 = arith.constant 0 : i32
    return %c0_i32, %c0_i32_0 : i32, i32
  }
  func.func @transform_5(%arg0: i32, %arg1: i32, %arg2: i32) -> (i32, i32) {
    %c0_i32 = arith.constant 0 : i32
    %c0_i32_0 = arith.constant 0 : i32
    %c0_i32_1 = arith.constant 0 : i32
    return %c0_i32, %c0_i32_0 : i32, i32
  }
  func.func @transform_6(%arg0: i32, %arg1: i32, %arg2: i32) -> (i32, i32, i32) {
    %c0_i32 = arith.constant 0 : i32
    %c0_i32_0 = arith.constant 0 : i32
    return %arg0, %arg1, %c0_i32 : i32, i32, i32
  }
}

</mosaic_0001>

<llo_original>
// kernel: stn3d_forward.1
$region0: #{stn3d_forward.1}
  #allocation0 [shape = 'u32[]', space=smem, size = 0x4, offset = 0x4, fixed_abs, tag = 'smem constant byte address 0x4 - core index']
  #allocation1 [shape = 'u32[72,128]{1,0:T(1,128)}', space=vmem, size = 0x9000, scoped, tag = 'internal scratch']
  %s0 = inlined_call_operand.vmem [shape: f32[2,16,3], index: 0, kind: input, shape index: {}]
  %s1 = inlined_call_operand.hbm [shape: f32[3,64], index: 1, kind: input, shape index: {}]
  %s2 = inlined_call_operand.hbm [shape: f32[1,64], index: 2, kind: input, shape index: {}]
  %s3 = inlined_call_operand.vmem [shape: bf16[64,128], index: 3, kind: input, shape index: {}]
  %s4 = inlined_call_operand.hbm [shape: f32[1,128], index: 4, kind: input, shape index: {}]
  %s5 = inlined_call_operand.vmem [shape: bf16[128,1024], index: 5, kind: input, shape index: {}]
  %s6 = inlined_call_operand.vmem [shape: f32[1,2,1024], index: 6, kind: output, shape index: {}]
  %s7 = sld [smem:[#allocation0]]
  $region78: #{stn3d_forward.1} parent=0
    _
  %s9 = ssub.s32 1, %s7
  %s10 = scalar_select 0, %s9, %s7
  $region1: #{stn3d_forward.1} parent=0
    #allocation2 [shape = 'u8[2048]{0}', space=vmem, size = 0x800, scoped, tag = 'input window, operand 1, single buffered']
    #allocation3 [shape = 's32[1]{0}', space=sflag, size = 0x4, scoped, tag = 'scoped memory for stn3d_forward.1']
    #allocation4 [shape = 'u8[512]{0}', space=vmem, size = 0x400, scoped, tag = 'input window, operand 2, single buffered']
    #allocation5 [shape = 's32[1]{0}', space=sflag, size = 0x4, scoped, tag = 'scoped memory for stn3d_forward.1']
    #allocation6 [shape = 'u8[512]{0}', space=vmem, size = 0x400, scoped, tag = 'input window, operand 4, single buffered']
    %11 = vsyncpa [#allocation3], 0
    %12 = vsyncpa [#allocation5], 0
    // Predicated region
    $region2: #{stn3d_forward.1} parent=1 // pred_check
      _
    $region3: #{stn3d_forward.1} parent=1 // pred_check_branch
      %14 = sbr.rel (0) target = $region5
    $region4: #{stn3d_forward.1} parent=1 // pred_region
      %s15 = sadd.s32 0, 0
      %s16 = smul.u32 2, %s15
      %p17 = scmp.lt.s32.totalorder %s16, 1
      %s18 = scalar_select %p17, %s16, 1
      %s19 = smul.addr %s18, 8
      %s20 = scalar_lea.vmem %s0, %s19
      %s21 = sadd.s32 0, 0
      %s22 = smul.u32 2, %s21
    $region5: #{stn3d_forward.1} parent=1 // pred_fallthru
      _
    // Predicated region
    $region6: #{stn3d_forward.1} parent=1 // pred_check
      _
    $region7: #{stn3d_forward.1} parent=1 // pred_check_branch
      %24 = sbr.rel (0) target = $region9
    $region8: #{stn3d_forward.1} parent=1 // pred_region
      %26 = vsyncadd [#allocation3], 0
      %s28 = sshll.u32 %s1, 4
      %s29 = int_to_ptr.hbm [resolvable:$true] %s28
      %s30 = sshll.u32 [#allocation2], 4
      %s31 = int_to_ptr.vmem [resolvable:$true] %s30
      %33 = dma.hbm_to_vmem [thread:$0]  %s29, 64, %s31, [#allocation3]
    $region9: #{stn3d_forward.1} parent=1 // pred_fallthru
      _
    // Predicated region
    $region10: #{stn3d_forward.1} parent=1 // pred_check
      _
    $region11: #{stn3d_forward.1} parent=1 // pred_check_branch
      %35 = sbr.rel (0) target = $region13
    $region12: #{stn3d_forward.1} parent=1 // pred_region
      %37 = vsyncadd [#allocation5], 0
      %s39 = sshll.u32 %s2, 4
      %s40 = int_to_ptr.hbm [resolvable:$true] %s39
      %s41 = sshll.u32 [#allocation4], 4
      %s42 = int_to_ptr.vmem [resolvable:$true] %s41
      %44 = dma.hbm_to_vmem [thread:$0]  %s40, 16, %s42, [#allocation5]
    $region13: #{stn3d_forward.1} parent=1 // pred_fallthru
      _
    // Predicated region
    $region14: #{stn3d_forward.1} parent=1 // pred_check
      _
    $region15: #{stn3d_forward.1} parent=1 // pred_check_branch
      %46 = sbr.rel (0) target = $region17
    $region16: #{stn3d_forward.1} parent=1 // pred_region
      _
    $region17: #{stn3d_forward.1} parent=1 // pred_fallthru
      _
    // Predicated region
    $region18: #{stn3d_forward.1} parent=1 // pred_check
      _
    $region19: #{stn3d_forward.1} parent=1 // pred_check_branch
      %48 = sbr.rel (0) target = $region21
    $region20: #{stn3d_forward.1} parent=1 // pred_region
      %50 = vsyncadd [#allocation5], 0
      %s52 = sshll.u32 %s4, 4
      %s53 = int_to_ptr.hbm [resolvable:$true] %s52
      %s54 = sshll.u32 [#allocation6], 4
      %s55 = int_to_ptr.vmem [resolvable:$true] %s54
      %57 = dma.hbm_to_vmem [thread:$0]  %s53, 16, %s55, [#allocation5]
    $region21: #{stn3d_forward.1} parent=1 // pred_fallthru
      _
    // Predicated region
    $region22: #{stn3d_forward.1} parent=1 // pred_check
      _
    $region23: #{stn3d_forward.1} parent=1 // pred_check_branch
      %59 = sbr.rel (0) target = $region25
    $region24: #{stn3d_forward.1} parent=1 // pred_region
      _
    $region25: #{stn3d_forward.1} parent=1 // pred_fallthru
      _
    // Predicated region
    $region26: #{stn3d_forward.1} parent=1 // pred_check
      _
    $region27: #{stn3d_forward.1} parent=1 // pred_check_branch
      %61 = sbr.rel (0) target = $region29
    $region28: #{stn3d_forward.1} parent=1 // pred_region
      %63 = dma.done [#allocation3], 64
    $region29: #{stn3d_forward.1} parent=1 // pred_fallthru
      _
    // Predicated region
    $region30: #{stn3d_forward.1} parent=1 // pred_check
      _
    $region31: #{stn3d_forward.1} parent=1 // pred_check_branch
      %65 = sbr.rel (0) target = $region33
    $region32: #{stn3d_forward.1} parent=1 // pred_region
      %67 = dma.done [#allocation5], 16
    $region33: #{stn3d_forward.1} parent=1 // pred_fallthru
      _
    // Predicated region
    $region34: #{stn3d_forward.1} parent=1 // pred_check
      _
    $region35: #{stn3d_forward.1} parent=1 // pred_check_branch
      %69 = sbr.rel (0) target = $region37
    $region36: #{stn3d_forward.1} parent=1 // pred_region
      %71 = dma.done [#allocation5], 16
    $region37: #{stn3d_forward.1} parent=1 // pred_fallthru
      _
    %s72 = sadd.s32 0, 0
    %s73 = smul.u32 2, %s72
    %p74 = scmp.lt.s32.totalorder %s73, 1
    %s75 = scalar_select %p74, %s73, 1
    %s76 = smul.addr %s75, 8
    %s77 = scalar_lea.vmem %s0, %s76
    %s78 = sadd.s32 0, 0
    %s79 = smul.u32 2, %s78
    %p80 = scmp.lt.s32.totalorder %s79, 1
    %s81 = scalar_select %p80, %s79, 1
    %s82 = smul.addr %s81, 8
    %s83 = scalar_lea.vmem %s0, %s82
    %s84 = sadd.s32 0, 0
    %s85 = smul.u32 2, %s84
    %v87 = vld [vmem:[%s83] sm:$0xff]
    %v88 = vld [vmem:[%s83 + $0x8] sm:$0xff]
    %v89 = vld [vmem:[%s83 + $0x10] sm:$0xff]
    %v90 = vld [vmem:[%s83 + $0x18] sm:$0xff]
    %v91 = vld [vmem:[#allocation2] sm:$0x7]
    %93 = vset.pattern.permute.xlu0 0
    %94 = vperm.xlu0 %93, %v87
    %v95 = vpop.permute.xlu0 %94
    %98 = vset.pattern.permute.xlu0 0
    %99 = vperm.xlu0 %98, %v88
    %v100 = vpop.permute.xlu0 %99
    %103 = vset.pattern.permute.xlu0 0
    %104 = vperm.xlu0 %103, %v89
    %v105 = vpop.permute.xlu0 %104
    %108 = vset.pattern.permute.xlu0 0
    %109 = vperm.xlu0 %108, %v90
    %v110 = vpop.permute.xlu0 %109
    %v112 = vperm.slane %v91, 0
    %v113 = vmul.f32 %v95, %v112
    %v114 = vmul.f32 %v100, %v112
    %v115 = vmul.f32 %v105, %v112
    %v116 = vmul.f32 %v110, %v112
    %117 = vset.pattern.permute.xlu0 1
    %118 = vperm.xlu0 %117, %v87
    %v119 = vpop.permute.xlu0 %118
    %121 = vset.pattern.permute.xlu0 1
    %122 = vperm.xlu0 %121, %v88
    %v123 = vpop.permute.xlu0 %122
    %125 = vset.pattern.permute.xlu0 1
    %126 = vperm.xlu0 %125, %v89
    %v127 = vpop.permute.xlu0 %126
    %129 = vset.pattern.permute.xlu0 1
    %130 = vperm.xlu0 %129, %v90
    %v131 = vpop.permute.xlu0 %130
    %v133 = vperm.slane %v91, 1
    %v134 = vmul.f32 %v119, %v133
    %v135 = vmul.f32 %v123, %v133
    %v136 = vmul.f32 %v127, %v133
    %v137 = vmul.f32 %v131, %v133
    %v138 = vadd.f32 %v113, %v134
    %v139 = vadd.f32 %v114, %v135
    %v140 = vadd.f32 %v115, %v136
    %v141 = vadd.f32 %v116, %v137
    %142 = vset.pattern.permute.xlu0 2
    %143 = vperm.xlu0 %142, %v87
    %v144 = vpop.permute.xlu0 %143
    %146 = vset.pattern.permute.xlu0 2
    %147 = vperm.xlu0 %146, %v88
    %v148 = vpop.permute.xlu0 %147
    %150 = vset.pattern.permute.xlu0 2
    %151 = vperm.xlu0 %150, %v89
    %v152 = vpop.permute.xlu0 %151
    %154 = vset.pattern.permute.xlu0 2
    %155 = vperm.xlu0 %154, %v90
    %v156 = vpop.permute.xlu0 %155
    %v158 = vperm.slane %v91, 2
    %v159 = vmul.f32 %v144, %v158
    %v160 = vmul.f32 %v148, %v158
    %v161 = vmul.f32 %v152, %v158
    %v162 = vmul.f32 %v156, %v158
    %v163 = vadd.f32 %v138, %v159
    %v164 = vadd.f32 %v139, %v160
    %v165 = vadd.f32 %v140, %v161
    %v166 = vadd.f32 %v141, %v162
    %v167 = vld [vmem:[#allocation4] sm:$0x1]
    %v169 = vperm.slane %v167, 0
    %v171 = vadd.f32 %v163, %v169
    %v172 = vadd.f32 %v164, %v169
    %v173 = vadd.f32 %v165, %v169
    %v174 = vadd.f32 %v166, %v169
    %v175 = vmax.f32 %v171, 0.0
    %v176 = vmax.f32 %v172, 0.0
    %v177 = vmax.f32 %v173, 0.0
    %v178 = vmax.f32 %v174, 0.0
    %v179 = vpack.c.bf16 %v176, %v175
    %v180 = vpack.c.bf16 %v178, %v177
    %v181 = vld [vmem:[%s3] sm:$0xf]
    %v182 = vld [vmem:[%s3 + $0x4] sm:$0xf]
    %v183 = vld [vmem:[%s3 + $0x8] sm:$0xf]
    %v184 = vld [vmem:[%s3 + $0xc] sm:$0xf]
    %v185 = vld [vmem:[%s3 + $0x10] sm:$0xf]
    %v186 = vld [vmem:[%s3 + $0x14] sm:$0xf]
    %v187 = vld [vmem:[%s3 + $0x18] sm:$0xf]
    %v188 = vld [vmem:[%s3 + $0x1c] sm:$0xf]
    %v189 = vld [vmem:[#allocation6] sm:$0x1]
    %v191 = vperm.slane %v189, 0
    %v201 = vunpack.c.l.b16 %v181
    %v202 = vunpack.c.l.b16 %v182
    %v203 = vunpack.c.l.b16 %v183
    %v204 = vunpack.c.l.b16 %v184
    %v205 = vunpack.c.l.b16 %v185
    %v206 = vunpack.c.l.b16 %v186
    %v207 = vunpack.c.l.b16 %v187
    %v208 = vunpack.c.l.b16 %v188
    %v209 = vpack.c.b16 %v202, %v201
    %v210 = vpack.c.b16 %v204, %v203
    %v211 = vpack.c.b16 %v206, %v205
    %v212 = vpack.c.b16 %v208, %v207
    %vm217 = vcmask 523264
    %v219 = vsel %vm217, %v179, 0
    %v222 = vsel %vm217, %v180, 0
    %224 = vmatpush.bf16.msra.mxu0 0
    %225 = vmatpush.bf16.msra.mxu0 0
    %226 = vmatpush.bf16.msra.mxu0 0
    %227 = vmatpush.bf16.msra.mxu0 0
    %228 = vmatpush.bf16.msra.mxu0 %v212
    %229 = vmatpush.bf16.msra.mxu0 %v211
    %230 = vmatpush.bf16.msra.mxu0 %v210
    %231 = vmatpush.bf16.msra.mxu0 %v209
    %232 = vmatmul.bf16.gmra.mxu0 %v219
    %v233 = vpop.f32.mrf.mxu0
    %v234 = vadd.f32 %v191, %v233
    %v235 = vpop.f32.mrf.mxu0
    %v236 = vadd.f32 %v191, %v235
    %237 = vmatmul.bf16.gmra.mxu0 %v222
    %v238 = vpop.f32.mrf.mxu0
    %v239 = vadd.f32 %v191, %v238
    %v240 = vpop.f32.mrf.mxu0
    %v241 = vadd.f32 %v191, %v240
    %242 = vdwg.mxu0
    %v243 = vmax.f32 %v234, 0.0
    %v244 = vmax.f32 %v236, 0.0
    %v245 = vmax.f32 %v239, 0.0
    %v246 = vmax.f32 %v241, 0.0
    %v247 = vpack.c.bf16 %v244, %v243
    %v248 = vpack.c.bf16 %v246, %v245
    %v249 = vld [vmem:[%s5] sm:$0xff]
    %v250 = vld [vmem:[%s5 + $0x20] sm:$0xff]
    %v251 = vld [vmem:[%s5 + $0x40] sm:$0xff]
    %v252 = vld [vmem:[%s5 + $0x60] sm:$0xff]
    %v253 = vld [vmem:[%s5 + $0x80] sm:$0xff]
    %v254 = vld [vmem:[%s5 + $0xa0] sm:$0xff]
    %v255 = vld [vmem:[%s5 + $0xc0] sm:$0xff]
    %v256 = vld [vmem:[%s5 + $0xe0] sm:$0xff]
    %v257 = vld [vmem:[%s5 + $0x100] sm:$0xff]
    %v258 = vld [vmem:[%s5 + $0x120] sm:$0xff]
    %v259 = vld [vmem:[%s5 + $0x140] sm:$0xff]
    %v260 = vld [vmem:[%s5 + $0x160] sm:$0xff]
    %v261 = vld [vmem:[%s5 + $0x180] sm:$0xff]
    %v262 = vld [vmem:[%s5 + $0x1a0] sm:$0xff]
    %v263 = vld [vmem:[%s5 + $0x1c0] sm:$0xff]
    %v264 = vld [vmem:[%s5 + $0x1e0] sm:$0xff]
    %v281 = vunpack.c.l.b16 %v249
    %v282 = vunpack.c.h.b16 %v249
    %v283 = vunpack.c.l.b16 %v250
    %v284 = vunpack.c.h.b16 %v250
    %v285 = vunpack.c.l.b16 %v251
    %v286 = vunpack.c.h.b16 %v251
    %v287 = vunpack.c.l.b16 %v252
    %v288 = vunpack.c.h.b16 %v252
    %v289 = vunpack.c.l.b16 %v253
    %v290 = vunpack.c.h.b16 %v253
    %v291 = vunpack.c.l.b16 %v254
    %v292 = vunpack.c.h.b16 %v254
    %v293 = vunpack.c.l.b16 %v255
    %v294 = vunpack.c.h.b16 %v255
    %v295 = vunpack.c.l.b16 %v256
    %v296 = vunpack.c.h.b16 %v256
    %v297 = vunpack.c.l.b16 %v257
    %v298 = vunpack.c.h.b16 %v257
    %v299 = vunpack.c.l.b16 %v258
    %v300 = vunpack.c.h.b16 %v258
    %v301 = vunpack.c.l.b16 %v259
    %v302 = vunpack.c.h.b16 %v259
    %v303 = vunpack.c.l.b16 %v260
    %v304 = vunpack.c.h.b16 %v260
    %v305 = vunpack.c.l.b16 %v261
    %v306 = vunpack.c.h.b16 %v261
    %v307 = vunpack.c.l.b16 %v262
    %v308 = vunpack.c.h.b16 %v262
    %v309 = vunpack.c.l.b16 %v263
    %v310 = vunpack.c.h.b16 %v263
    %v311 = vunpack.c.l.b16 %v264
    %v312 = vunpack.c.h.b16 %v264
    %v313 = vpack.c.b16 %v283, %v281
    %v314 = vpack.c.b16 %v284, %v282
    %v315 = vpack.c.b16 %v287, %v285
    %v316 = vpack.c.b16 %v288, %v286
    %v317 = vpack.c.b16 %v291, %v289
    %v318 = vpack.c.b16 %v292, %v290
    %v319 = vpack.c.b16 %v295, %v293
    %v320 = vpack.c.b16 %v296, %v294
    %v321 = vpack.c.b16 %v299, %v297
    %v322 = vpack.c.b16 %v300, %v298
    %v323 = vpack.c.b16 %v303, %v301
    %v324 = vpack.c.b16 %v304, %v302
    %v325 = vpack.c.b16 %v307, %v305
    %v326 = vpack.c.b16 %v308, %v306
    %v327 = vpack.c.b16 %v311, %v309
    %v328 = vpack.c.b16 %v312, %v310
    %345 = vmatpush.bf16.msra.mxu0 %v327
    %346 = vmatpush.bf16.msra.mxu0 %v325
    %347 = vmatpush.bf16.msra.mxu0 %v323
    %348 = vmatpush.bf16.msra.mxu0 %v321
    %349 = vmatpush.bf16.msra.mxu0 %v319
    %350 = vmatpush.bf16.msra.mxu0 %v317
    %351 = vmatpush.bf16.msra.mxu0 %v315
    %352 = vmatpush.bf16.msra.mxu0 %v313
    %353 = vmatmul.bf16.gmra.mxu0 %v247
    %v354 = vpop.f32.mrf.mxu0
    %v355 = vadd.f32 0.0, %v354
    %v356 = vpop.f32.mrf.mxu0
    %v357 = vadd.f32 0.0, %v356
    %358 = vmatmul.bf16.gmra.mxu0 %v248
    %v359 = vpop.f32.mrf.mxu0
    %v360 = vadd.f32 0.0, %v359
    %v361 = vpop.f32.mrf.mxu0
    %v362 = vadd.f32 0.0, %v361
    %363 = vdwg.mxu0
    %364 = vmatpush.bf16.msra.mxu0 %v328
    %365 = vmatpush.bf16.msra.mxu0 %v326
    %366 = vmatpush.bf16.msra.mxu0 %v324
    %367 = vmatpush.bf16.msra.mxu0 %v322
    %368 = vmatpush.bf16.msra.mxu0 %v320
    %369 = vmatpush.bf16.msra.mxu0 %v318
    %370 = vmatpush.bf16.msra.mxu0 %v316
    %371 = vmatpush.bf16.msra.mxu0 %v314
    %372 = vmatmul.bf16.gmra.mxu0 %v247
    %v373 = vpop.f32.mrf.mxu0
    %v374 = vadd.f32 0.0, %v373
    %v375 = vpop.f32.mrf.mxu0
    %v376 = vadd.f32 0.0, %v375
    %377 = vmatmul.bf16.gmra.mxu0 %v248
    %v378 = vpop.f32.mrf.mxu0
    %v379 = vadd.f32 0.0, %v378
    %v380 = vpop.f32.mrf.mxu0
    %v381 = vadd.f32 0.0, %v380
    %382 = vdwg.mxu0
    %v383 = vmax.f32 %v355, %v357
    %v384 = vrot.slane %v383, 4
    %v385 = vmax.f32 %v383, %v384
    %v386 = vrot.slane %v385, 2
    %v387 = vmax.f32 %v385, %v386
    %v388 = vrot.slane %v387, 1
    %v389 = vmax.f32 %v387, %v388
    %v390 = vmax.f32 %v374, %v376
    %v391 = vrot.slane %v390, 4
    %v392 = vmax.f32 %v390, %v391
    %v393 = vrot.slane %v392, 2
    %v394 = vmax.f32 %v392, %v393
    %v395 = vrot.slane %v394, 1
    %v396 = vmax.f32 %v394, %v395
    %v397 = vmax.f32 %v360, %v362
    %v398 = vrot.slane %v397, 4
    %v399 = vmax.f32 %v397, %v398
    %v400 = vrot.slane %v399, 2
    %v401 = vmax.f32 %v399, %v400
    %v402 = vrot.slane %v401, 1
    %v403 = vmax.f32 %v401, %v402
    %v404 = vmax.f32 %v379, %v381
    %v405 = vrot.slane %v404, 4
    %v406 = vmax.f32 %v404, %v405
    %v407 = vrot.slane %v406, 2
    %v408 = vmax.f32 %v406, %v407
    %v409 = vrot.slane %v408, 1
    %v410 = vmax.f32 %v408, %v409
    %p411 = scmp.eq.s32.totalorder 0, 0
    // Predicated region
    $region38: #{stn3d_forward.1} parent=1 // pred_check
      %p412 = pneg %p411
    $region39: #{stn3d_forward.1} parent=1 // pred_check_branch
      %414 = sbr.rel (%p412) target = $region41
    $region40: #{stn3d_forward.1} parent=1 // pred_region
      %v419 = vrot.slane %v396, 6
      %v420 = vrot.slane %v410, 6
      %vm421 = vcmask 1041408
      %v422 = vsel %vm421, %v389, %v419
      %v423 = vsel %vm421, %v403, %v420
      %vm424 = vcmask 1044484
      %v425 = vsel %vm424, %v422, %v422
      %vm426 = vcmask 1046534
      %v427 = vsel %vm426, %v422, %v425
      %v428 = vrot.slane %v423, 7
      %vm429 = vcmask 1041409
      %v430 = vsel %vm429, %v428, %v427
      %vm431 = vcmask 1043459
      %v432 = vsel %vm431, %v428, %v430
      %vm433 = vcmask 1045509
      %v434 = vsel %vm433, %v428, %v432
      %vm435 = vcmask 1047559
      %v436 = vsel %vm435, %v428, %v434
      %438 = vst [vmem:[%s6] sm:$0xf] %v436
    $region41: #{stn3d_forward.1} parent=1 // pred_fallthru
      _
    %p439 = scmp.ne.s32.totalorder 0, 0
    // Predicated region
    $region42: #{stn3d_forward.1} parent=1 // pred_check
      %p440 = pneg %p439
    $region43: #{stn3d_forward.1} parent=1 // pred_check_branch
      %442 = sbr.rel (%p440) target = $region45
    $region44: #{stn3d_forward.1} parent=1 // pred_region
      %v443 = vld [vmem:[%s6] sm:$0xf]
      %v448 = vrot.slane %v396, 6
      %v449 = vrot.slane %v410, 6
      %vm450 = vcmask 1041408
      %v451 = vsel %vm450, %v389, %v448
      %v452 = vsel %vm450, %v403, %v449
      %vm453 = vcmask 1044484
      %v454 = vsel %vm453, %v451, %v451
      %vm455 = vcmask 1046534
      %v456 = vsel %vm455, %v451, %v454
      %v457 = vrot.slane %v452, 7
      %vm458 = vcmask 1041409
      %v459 = vsel %vm458, %v457, %v456
      %vm460 = vcmask 1043459
      %v461 = vsel %vm460, %v457, %v459
      %vm462 = vcmask 1045509
      %v463 = vsel %vm462, %v457, %v461
      %vm464 = vcmask 1047559
      %v465 = vsel %vm464, %v457, %v463
      %v467 = vmax.f32 %v443, %v465
      %468 = vst [vmem:[%s6] sm:$0xf] %v467
    $region45: #{stn3d_forward.1} parent=1 // pred_fallthru
      _
    %v469 = vld [vmem:[%s5 + $0x8] sm:$0xff]
    %v470 = vld [vmem:[%s5 + $0x28] sm:$0xff]
    %v471 = vld [vmem:[%s5 + $0x48] sm:$0xff]
    %v472 = vld [vmem:[%s5 + $0x68] sm:$0xff]
    %v473 = vld [vmem:[%s5 + $0x88] sm:$0xff]
    %v474 = vld [vmem:[%s5 + $0xa8] sm:$0xff]
    %v475 = vld [vmem:[%s5 + $0xc8] sm:$0xff]
    %v476 = vld [vmem:[%s5 + $0xe8] sm:$0xff]
    %v477 = vld [vmem:[%s5 + $0x108] sm:$0xff]
    %v478 = vld [vmem:[%s5 + $0x128] sm:$0xff]
    %v479 = vld [vmem:[%s5 + $0x148] sm:$0xff]
    %v480 = vld [vmem:[%s5 + $0x168] sm:$0xff]
    %v481 = vld [vmem:[%s5 + $0x188] sm:$0xff]
    %v482 = vld [vmem:[%s5 + $0x1a8] sm:$0xff]
    %v483 = vld [vmem:[%s5 + $0x1c8] sm:$0xff]
    %v484 = vld [vmem:[%s5 + $0x1e8] sm:$0xff]
    %v501 = vunpack.c.l.b16 %v469
    %v502 = vunpack.c.h.b16 %v469
    %v503 = vunpack.c.l.b16 %v470
    %v504 = vunpack.c.h.b16 %v470
    %v505 = vunpack.c.l.b16 %v471
    %v506 = vunpack.c.h.b16 %v471
    %v507 = vunpack.c.l.b16 %v472
    %v508 = vunpack.c.h.b16 %v472
    %v509 = vunpack.c.l.b16 %v473
    %v510 = vunpack.c.h.b16 %v473
    %v511 = vunpack.c.l.b16 %v474
    %v512 = vunpack.c.h.b16 %v474
    %v513 = vunpack.c.l.b16 %v475
    %v514 = vunpack.c.h.b16 %v475
    %v515 = vunpack.c.l.b16 %v476
    %v516 = vunpack.c.h.b16 %v476
    %v517 = vunpack.c.l.b16 %v477
    %v518 = vunpack.c.h.b16 %v477
    %v519 = vunpack.c.l.b16 %v478
    %v520 = vunpack.c.h.b16 %v478
    %v521 = vunpack.c.l.b16 %v479
    %v522 = vunpack.c.h.b16 %v479
    %v523 = vunpack.c.l.b16 %v480
    %v524 = vunpack.c.h.b16 %v480
    %v525 = vunpack.c.l.b16 %v481
    %v526 = vunpack.c.h.b16 %v481
    %v527 = vunpack.c.l.b16 %v482
    %v528 = vunpack.c.h.b16 %v482
    %v529 = vunpack.c.l.b16 %v483
    %v530 = vunpack.c.h.b16 %v483
    %v531 = vunpack.c.l.b16 %v484
    %v532 = vunpack.c.h.b16 %v484
    %v533 = vpack.c.b16 %v503, %v501
    %v534 = vpack.c.b16 %v504, %v502
    %v535 = vpack.c.b16 %v507, %v505
    %v536 = vpack.c.b16 %v508, %v506
    %v537 = vpack.c.b16 %v511, %v509
    %v538 = vpack.c.b16 %v512, %v510
    %v539 = vpack.c.b16 %v515, %v513
    %v540 = vpack.c.b16 %v516, %v514
    %v541 = vpack.c.b16 %v519, %v517
    %v542 = vpack.c.b16 %v520, %v518
    %v543 = vpack.c.b16 %v523, %v521
    %v544 = vpack.c.b16 %v524, %v522
    %v545 = vpack.c.b16 %v527, %v525
    %v546 = vpack.c.b16 %v528, %v526
    %v547 = vpack.c.b16 %v531, %v529
    %v548 = vpack.c.b16 %v532, %v530
    %565 = vmatpush.bf16.msra.mxu0 %v547
    %566 = vmatpush.bf16.msra.mxu0 %v545
    %567 = vmatpush.bf16.msra.mxu0 %v543
    %568 = vmatpush.bf16.msra.mxu0 %v541
    %569 = vmatpush.bf16.msra.mxu0 %v539
    %570 = vmatpush.bf16.msra.mxu0 %v537
    %571 = vmatpush.bf16.msra.mxu0 %v535
    %572 = vmatpush.bf16.msra.mxu0 %v533
    %573 = vmatmul.bf16.gmra.mxu0 %v247
    %v574 = vpop.f32.mrf.mxu0
    %v575 = vadd.f32 0.0, %v574
    %v576 = vpop.f32.mrf.mxu0
    %v577 = vadd.f32 0.0, %v576
    %578 = vmatmul.bf16.gmra.mxu0 %v248
    %v579 = vpop.f32.mrf.mxu0
    %v580 = vadd.f32 0.0, %v579
    %v581 = vpop.f32.mrf.mxu0
    %v582 = vadd.f32 0.0, %v581
    %583 = vdwg.mxu0
    %584 = vmatpush.bf16.msra.mxu0 %v548
    %585 = vmatpush.bf16.msra.mxu0 %v546
    %586 = vmatpush.bf16.msra.mxu0 %v544
    %587 = vmatpush.bf16.msra.mxu0 %v542
    %588 = vmatpush.bf16.msra.mxu0 %v540
    %589 = vmatpush.bf16.msra.mxu0 %v538
    %590 = vmatpush.bf16.msra.mxu0 %v536
    %591 = vmatpush.bf16.msra.mxu0 %v534
    %592 = vmatmul.bf16.gmra.mxu0 %v247
    %v593 = vpop.f32.mrf.mxu0
    %v594 = vadd.f32 0.0, %v593
    %v595 = vpop.f32.mrf.mxu0
    %v596 = vadd.f32 0.0, %v595
    %597 = vmatmul.bf16.gmra.mxu0 %v248
    %v598 = vpop.f32.mrf.mxu0
    %v599 = vadd.f32 0.0, %v598
    %v600 = vpop.f32.mrf.mxu0
    %v601 = vadd.f32 0.0, %v600
    %602 = vdwg.mxu0
    %v603 = vmax.f32 %v575, %v577
    %v604 = vrot.slane %v603, 4
    %v605 = vmax.f32 %v603, %v604
    %v606 = vrot.slane %v605, 2
    %v607 = vmax.f32 %v605, %v606
    %v608 = vrot.slane %v607, 1
    %v609 = vmax.f32 %v607, %v608
    %v610 = vmax.f32 %v594, %v596
    %v611 = vrot.slane %v610, 4
    %v612 = vmax.f32 %v610, %v611
    %v613 = vrot.slane %v612, 2
    %v614 = vmax.f32 %v612, %v613
    %v615 = vrot.slane %v614, 1
    %v616 = vmax.f32 %v614, %v615
    %v617 = vmax.f32 %v580, %v582
    %v618 = vrot.slane %v617, 4
    %v619 = vmax.f32 %v617, %v618
    %v620 = vrot.slane %v619, 2
    %v621 = vmax.f32 %v619, %v620
    %v622 = vrot.slane %v621, 1
    %v623 = vmax.f32 %v621, %v622
    %v624 = vmax.f32 %v599, %v601
    %v625 = vrot.slane %v624, 4
    %v626 = vmax.f32 %v624, %v625
    %v627 = vrot.slane %v626, 2
    %v628 = vmax.f32 %v626, %v627
    %v629 = vrot.slane %v628, 1
    %v630 = vmax.f32 %v628, %v629
    // Predicated region
    $region46: #{stn3d_forward.1} parent=1 // pred_check
      %p631 = pneg %p411
    $region47: #{stn3d_forward.1} parent=1 // pred_check_branch
      %633 = sbr.rel (%p631) target = $region49
    $region48: #{stn3d_forward.1} parent=1 // pred_region
      %v638 = vrot.slane %v616, 6
      %v639 = vrot.slane %v630, 6
      %vm640 = vcmask 1041408
      %v641 = vsel %vm640, %v609, %v638
      %v642 = vsel %vm640, %v623, %v639
      %vm643 = vcmask 1044484
      %v644 = vsel %vm643, %v641, %v641
      %vm645 = vcmask 1046534
      %v646 = vsel %vm645, %v641, %v644
      %v647 = vrot.slane %v642, 7
      %vm648 = vcmask 1041409
      %v649 = vsel %vm648, %v647, %v646
      %vm650 = vcmask 1043459
      %v651 = vsel %vm650, %v647, %v649
      %vm652 = vcmask 1045509
      %v653 = vsel %vm652, %v647, %v651
      %vm654 = vcmask 1047559
      %v655 = vsel %vm654, %v647, %v653
      %657 = vst [vmem:[%s6 + $0x4] sm:$0xf] %v655
    $region49: #{stn3d_forward.1} parent=1 // pred_fallthru
      _
    // Predicated region
    $region50: #{stn3d_forward.1} parent=1 // pred_check
      %p658 = pneg %p439
    $region51: #{stn3d_forward.1} parent=1 // pred_check_branch
      %660 = sbr.rel (%p658) target = $region53
    $region52: #{stn3d_forward.1} parent=1 // pred_region
      %v661 = vld [vmem:[%s6 + $0x4] sm:$0xf]
      %v666 = vrot.slane %v616, 6
      %v667 = vrot.slane %v630, 6
      %vm668 = vcmask 1041408
      %v669 = vsel %vm668, %v609, %v666
      %v670 = vsel %vm668, %v623, %v667
      %vm671 = vcmask 1044484
      %v672 = vsel %vm671, %v669, %v669
      %vm673 = vcmask 1046534
      %v674 = vsel %vm673, %v669, %v672
      %v675 = vrot.slane %v670, 7
      %vm676 = vcmask 1041409
      %v677 = vsel %vm676, %v675, %v674
      %vm678 = vcmask 1043459
      %v679 = vsel %vm678, %v675, %v677
      %vm680 = vcmask 1045509
      %v681 = vsel %vm680, %v675, %v679
      %vm682 = vcmask 1047559
      %v683 = vsel %vm682, %v675, %v681
      %v685 = vmax.f32 %v661, %v683
      %686 = vst [vmem:[%s6 + $0x4] sm:$0xf] %v685
    $region53: #{stn3d_forward.1} parent=1 // pred_fallthru
      _
    %v687 = vld [vmem:[%s5 + $0x10] sm:$0xff]
    %v688 = vld [vmem:[%s5 + $0x30] sm:$0xff]
    %v689 = vld [vmem:[%s5 + $0x50] sm:$0xff]
    %v690 = vld [vmem:[%s5 + $0x70] sm:$0xff]
    %v691 = vld [vmem:[%s5 + $0x90] sm:$0xff]
    %v692 = vld [vmem:[%s5 + $0xb0] sm:$0xff]
    %v693 = vld [vmem:[%s5 + $0xd0] sm:$0xff]
    %v694 = vld [vmem:[%s5 + $0xf0] sm:$0xff]
    %v695 = vld [vmem:[%s5 + $0x110] sm:$0xff]
    %v696 = vld [vmem:[%s5 + $0x130] sm:$0xff]
    %v697 = vld [vmem:[%s5 + $0x150] sm:$0xff]
    %v698 = vld [vmem:[%s5 + $0x170] sm:$0xff]
    %v699 = vld [vmem:[%s5 + $0x190] sm:$0xff]
    %v700 = vld [vmem:[%s5 + $0x1b0] sm:$0xff]
    %v701 = vld [vmem:[%s5 + $0x1d0] sm:$0xff]
    %v702 = vld [vmem:[%s5 + $0x1f0] sm:$0xff]
    %v719 = vunpack.c.l.b16 %v687
    %v720 = vunpack.c.h.b16 %v687
    %v721 = vunpack.c.l.b16 %v688
    %v722 = vunpack.c.h.b16 %v688
    %v723 = vunpack.c.l.b16 %v689
    %v724 = vunpack.c.h.b16 %v689
    %v725 = vunpack.c.l.b16 %v690
    %v726 = vunpack.c.h.b16 %v690
    %v727 = vunpack.c.l.b16 %v691
    %v728 = vunpack.c.h.b16 %v691
    %v729 = vunpack.c.l.b16 %v692
    %v730 = vunpack.c.h.b16 %v692
    %v731 = vunpack.c.l.b16 %v693
    %v732 = vunpack.c.h.b16 %v693
    %v733 = vunpack.c.l.b16 %v694
    %v734 = vunpack.c.h.b16 %v694
    %v735 = vunpack.c.l.b16 %v695
    %v736 = vunpack.c.h.b16 %v695
    %v737 = vunpack.c.l.b16 %v696
    %v738 = vunpack.c.h.b16 %v696
    %v739 = vunpack.c.l.b16 %v697
    %v740 = vunpack.c.h.b16 %v697
    %v741 = vunpack.c.l.b16 %v698
    %v742 = vunpack.c.h.b16 %v698
    %v743 = vunpack.c.l.b16 %v699
    %v744 = vunpack.c.h.b16 %v699
    %v745 = vunpack.c.l.b16 %v700
    %v746 = vunpack.c.h.b16 %v700
    %v747 = vunpack.c.l.b16 %v701
    %v748 = vunpack.c.h.b16 %v701
    %v749 = vunpack.c.l.b16 %v702
    %v750 = vunpack.c.h.b16 %v702
    %v751 = vpack.c.b16 %v721, %v719
    %v752 = vpack.c.b16 %v722, %v720
    %v753 = vpack.c.b16 %v725, %v723
    %v754 = vpack.c.b16 %v726, %v724
    %v755 = vpack.c.b16 %v729, %v727
    %v756 = vpack.c.b16 %v730, %v728
    %v757 = vpack.c.b16 %v733, %v731
    %v758 = vpack.c.b16 %v734, %v732
    %v759 = vpack.c.b16 %v737, %v735
    %v760 = vpack.c.b16 %v738, %v736
    %v761 = vpack.c.b16 %v741, %v739
    %v762 = vpack.c.b16 %v742, %v740
    %v763 = vpack.c.b16 %v745, %v743
    %v764 = vpack.c.b16 %v746, %v744
    %v765 = vpack.c.b16 %v749, %v747
    %v766 = vpack.c.b16 %v750, %v748
    %783 = vmatpush.bf16.msra.mxu0 %v765
    %784 = vmatpush.bf16.msra.mxu0 %v763
    %785 = vmatpush.bf16.msra.mxu0 %v761
    %786 = vmatpush.bf16.msra.mxu0 %v759
    %787 = vmatpush.bf16.msra.mxu0 %v757
    %788 = vmatpush.bf16.msra.mxu0 %v755
    %789 = vmatpush.bf16.msra.mxu0 %v753
    %790 = vmatpush.bf16.msra.mxu0 %v751
    %791 = vmatmul.bf16.gmra.mxu0 %v247
    %v792 = vpop.f32.mrf.mxu0
    %v793 = vadd.f32 0.0, %v792
    %v794 = vpop.f32.mrf.mxu0
    %v795 = vadd.f32 0.0, %v794
    %796 = vmatmul.bf16.gmra.mxu0 %v248
    %v797 = vpop.f32.mrf.mxu0
    %v798 = vadd.f32 0.0, %v797
    %v799 = vpop.f32.mrf.mxu0
    %v800 = vadd.f32 0.0, %v799
    %801 = vdwg.mxu0
    %802 = vmatpush.bf16.msra.mxu0 %v766
    %803 = vmatpush.bf16.msra.mxu0 %v764
    %804 = vmatpush.bf16.msra.mxu0 %v762
    %805 = vmatpush.bf16.msra.mxu0 %v760
    %806 = vmatpush.bf16.msra.mxu0 %v758
    %807 = vmatpush.bf16.msra.mxu0 %v756
    %808 = vmatpush.bf16.msra.mxu0 %v754
    %809 = vmatpush.bf16.msra.mxu0 %v752
    %810 = vmatmul.bf16.gmra.mxu0 %v247
    %v811 = vpop.f32.mrf.mxu0
    %v812 = vadd.f32 0.0, %v811
    %v813 = vpop.f32.mrf.mxu0
    %v814 = vadd.f32 0.0, %v813
    %815 = vmatmul.bf16.gmra.mxu0 %v248
    %v816 = vpop.f32.mrf.mxu0
    %v817 = vadd.f32 0.0, %v816
    %v818 = vpop.f32.mrf.mxu0
    %v819 = vadd.f32 0.0, %v818
    %820 = vdwg.mxu0
    %v821 = vmax.f32 %v793, %v795
    %v822 = vrot.slane %v821, 4
    %v823 = vmax.f32 %v821, %v822
    %v824 = vrot.slane %v823, 2
    %v825 = vmax.f32 %v823, %v824
    %v826 = vrot.slane %v825, 1
    %v827 = vmax.f32 %v825, %v826
    %v828 = vmax.f32 %v812, %v814
    %v829 = vrot.slane %v828, 4
    %v830 = vmax.f32 %v828, %v829
    %v831 = vrot.slane %v830, 2
    %v832 = vmax.f32 %v830, %v831
    %v833 = vrot.slane %v832, 1
    %v834 = vmax.f32 %v832, %v833
    %v835 = vmax.f32 %v798, %v800
    %v836 = vrot.slane %v835, 4
    %v837 = vmax.f32 %v835, %v836
    %v838 = vrot.slane %v837, 2
    %v839 = vmax.f32 %v837, %v838
    %v840 = vrot.slane %v839, 1
    %v841 = vmax.f32 %v839, %v840
    %v842 = vmax.f32 %v817, %v819
    %v843 = vrot.slane %v842, 4
    %v844 = vmax.f32 %v842, %v843
    %v845 = vrot.slane %v844, 2
    %v846 = vmax.f32 %v844, %v845
    %v847 = vrot.slane %v846, 1
    %v848 = vmax.f32 %v846, %v847
    // Predicated region
    $region54: #{stn3d_forward.1} parent=1 // pred_check
      %p849 = pneg %p411
    $region55: #{stn3d_forward.1} parent=1 // pred_check_branch
      %851 = sbr.rel (%p849) target = $region57
    $region56: #{stn3d_forward.1} parent=1 // pred_region
      %v856 = vrot.slane %v834, 6
      %v857 = vrot.slane %v848, 6
      %vm858 = vcmask 1041408
      %v859 = vsel %vm858, %v827, %v856
      %v860 = vsel %vm858, %v841, %v857
      %vm861 = vcmask 1044484
      %v862 = vsel %vm861, %v859, %v859
      %vm863 = vcmask 1046534
      %v864 = vsel %vm863, %v859, %v862
      %v865 = vrot.slane %v860, 7
      %vm866 = vcmask 1041409
      %v867 = vsel %vm866, %v865, %v864
      %vm868 = vcmask 1043459
      %v869 = vsel %vm868, %v865, %v867
      %vm870 = vcmask 1045509
      %v871 = vsel %vm870, %v865, %v869
      %vm872 = vcmask 1047559
      %v873 = vsel %vm872, %v865, %v871
      %875 = vst [vmem:[%s6 + $0x8] sm:$0xf] %v873
    $region57: #{stn3d_forward.1} parent=1 // pred_fallthru
      _
    // Predicated region
    $region58: #{stn3d_forward.1} parent=1 // pred_check
      %p876 = pneg %p439
    $region59: #{stn3d_forward.1} parent=1 // pred_check_branch
      %878 = sbr.rel (%p876) target = $region61
    $region60: #{stn3d_forward.1} parent=1 // pred_region
      %v879 = vld [vmem:[%s6 + $0x8] sm:$0xf]
      %v884 = vrot.slane %v834, 6
      %v885 = vrot.slane %v848, 6
      %vm886 = vcmask 1041408
      %v887 = vsel %vm886, %v827, %v884
      %v888 = vsel %vm886, %v841, %v885
      %vm889 = vcmask 1044484
      %v890 = vsel %vm889, %v887, %v887
      %vm891 = vcmask 1046534
      %v892 = vsel %vm891, %v887, %v890
      %v893 = vrot.slane %v888, 7
      %vm894 = vcmask 1041409
      %v895 = vsel %vm894, %v893, %v892
      %vm896 = vcmask 1043459
      %v897 = vsel %vm896, %v893, %v895
      %vm898 = vcmask 1045509
      %v899 = vsel %vm898, %v893, %v897
      %vm900 = vcmask 1047559
      %v901 = vsel %vm900, %v893, %v899
      %v903 = vmax.f32 %v879, %v901
      %904 = vst [vmem:[%s6 + $0x8] sm:$0xf] %v903
    $region61: #{stn3d_forward.1} parent=1 // pred_fallthru
      _
    %v905 = vld [vmem:[%s5 + $0x18] sm:$0xff]
    %v906 = vld [vmem:[%s5 + $0x38] sm:$0xff]
    %v907 = vld [vmem:[%s5 + $0x58] sm:$0xff]
    %v908 = vld [vmem:[%s5 + $0x78] sm:$0xff]
    %v909 = vld [vmem:[%s5 + $0x98] sm:$0xff]
    %v910 = vld [vmem:[%s5 + $0xb8] sm:$0xff]
    %v911 = vld [vmem:[%s5 + $0xd8] sm:$0xff]
    %v912 = vld [vmem:[%s5 + $0xf8] sm:$0xff]
    %v913 = vld [vmem:[%s5 + $0x118] sm:$0xff]
    %v914 = vld [vmem:[%s5 + $0x138] sm:$0xff]
    %v915 = vld [vmem:[%s5 + $0x158] sm:$0xff]
    %v916 = vld [vmem:[%s5 + $0x178] sm:$0xff]
    %v917 = vld [vmem:[%s5 + $0x198] sm:$0xff]
    %v918 = vld [vmem:[%s5 + $0x1b8] sm:$0xff]
    %v919 = vld [vmem:[%s5 + $0x1d8] sm:$0xff]
    %v920 = vld [vmem:[%s5 + $0x1f8] sm:$0xff]
    %v937 = vunpack.c.l.b16 %v905
    %v938 = vunpack.c.h.b16 %v905
    %v939 = vunpack.c.l.b16 %v906
    %v940 = vunpack.c.h.b16 %v906
    %v941 = vunpack.c.l.b16 %v907
    %v942 = vunpack.c.h.b16 %v907
    %v943 = vunpack.c.l.b16 %v908
    %v944 = vunpack.c.h.b16 %v908
    %v945 = vunpack.c.l.b16 %v909
    %v946 = vunpack.c.h.b16 %v909
    %v947 = vunpack.c.l.b16 %v910
    %v948 = vunpack.c.h.b16 %v910
    %v949 = vunpack.c.l.b16 %v911
    %v950 = vunpack.c.h.b16 %v911
    %v951 = vunpack.c.l.b16 %v912
    %v952 = vunpack.c.h.b16 %v912
    %v953 = vunpack.c.l.b16 %v913
    %v954 = vunpack.c.h.b16 %v913
    %v955 = vunpack.c.l.b16 %v914
    %v956 = vunpack.c.h.b16 %v914
    %v957 = vunpack.c.l.b16 %v915
    %v958 = vunpack.c.h.b16 %v915
    %v959 = vunpack.c.l.b16 %v916
    %v960 = vunpack.c.h.b16 %v916
    %v961 = vunpack.c.l.b16 %v917
    %v962 = vunpack.c.h.b16 %v917
    %v963 = vunpack.c.l.b16 %v918
    %v964 = vunpack.c.h.b16 %v918
    %v965 = vunpack.c.l.b16 %v919
    %v966 = vunpack.c.h.b16 %v919
    %v967 = vunpack.c.l.b16 %v920
    %v968 = vunpack.c.h.b16 %v920
    %v969 = vpack.c.b16 %v939, %v937
    %v970 = vpack.c.b16 %v940, %v938
    %v971 = vpack.c.b16 %v943, %v941
    %v972 = vpack.c.b16 %v944, %v942
    %v973 = vpack.c.b16 %v947, %v945
    %v974 = vpack.c.b16 %v948, %v946
    %v975 = vpack.c.b16 %v951, %v949
    %v976 = vpack.c.b16 %v952, %v950
    %v977 = vpack.c.b16 %v955, %v953
    %v978 = vpack.c.b16 %v956, %v954
    %v979 = vpack.c.b16 %v959, %v957
    %v980 = vpack.c.b16 %v960, %v958
    %v981 = vpack.c.b16 %v963, %v961
    %v982 = vpack.c.b16 %v964, %v962
    %v983 = vpack.c.b16 %v967, %v965
    %v984 = vpack.c.b16 %v968, %v966
    %1001 = vmatpush.bf16.msra.mxu0 %v983
    %1002 = vmatpush.bf16.msra.mxu0 %v981
    %1003 = vmatpush.bf16.msra.mxu0 %v979
    %1004 = vmatpush.bf16.msra.mxu0 %v977
    %1005 = vmatpush.bf16.msra.mxu0 %v975
    %1006 = vmatpush.bf16.msra.mxu0 %v973
    %1007 = vmatpush.bf16.msra.mxu0 %v971
    %1008 = vmatpush.bf16.msra.mxu0 %v969
    %1009 = vmatmul.bf16.gmra.mxu0 %v247
    %v1010 = vpop.f32.mrf.mxu0
    %v1011 = vadd.f32 0.0, %v1010
    %v1012 = vpop.f32.mrf.mxu0
    %v1013 = vadd.f32 0.0, %v1012
    %1014 = vmatmul.bf16.gmra.mxu0 %v248
    %v1015 = vpop.f32.mrf.mxu0
    %v1016 = vadd.f32 0.0, %v1015
    %v1017 = vpop.f32.mrf.mxu0
    %v1018 = vadd.f32 0.0, %v1017
    %1019 = vdwg.mxu0
    %1020 = vmatpush.bf16.msra.mxu0 %v984
    %1021 = vmatpush.bf16.msra.mxu0 %v982
    %1022 = vmatpush.bf16.msra.mxu0 %v980
    %1023 = vmatpush.bf16.msra.mxu0 %v978
    %1024 = vmatpush.bf16.msra.mxu0 %v976
    %1025 = vmatpush.bf16.msra.mxu0 %v974
    %1026 = vmatpush.bf16.msra.mxu0 %v972
    %1027 = vmatpush.bf16.msra.mxu0 %v970
    %1028 = vmatmul.bf16.gmra.mxu0 %v247
    %v1029 = vpop.f32.mrf.mxu0
    %v1030 = vadd.f32 0.0, %v1029
    %v1031 = vpop.f32.mrf.mxu0
    %v1032 = vadd.f32 0.0, %v1031
    %1033 = vmatmul.bf16.gmra.mxu0 %v248
    %v1034 = vpop.f32.mrf.mxu0
    %v1035 = vadd.f32 0.0, %v1034
    %v1036 = vpop.f32.mrf.mxu0
    %v1037 = vadd.f32 0.0, %v1036
    %1038 = vdwg.mxu0
    %v1039 = vmax.f32 %v1011, %v1013
    %v1040 = vrot.slane %v1039, 4
    %v1041 = vmax.f32 %v1039, %v1040
    %v1042 = vrot.slane %v1041, 2
    %v1043 = vmax.f32 %v1041, %v1042
    %v1044 = vrot.slane %v1043, 1
    %v1045 = vmax.f32 %v1043, %v1044
    %v1046 = vmax.f32 %v1030, %v1032
    %v1047 = vrot.slane %v1046, 4
    %v1048 = vmax.f32 %v1046, %v1047
    %v1049 = vrot.slane %v1048, 2
    %v1050 = vmax.f32 %v1048, %v1049
    %v1051 = vrot.slane %v1050, 1
    %v1052 = vmax.f32 %v1050, %v1051
    %v1053 = vmax.f32 %v1016, %v1018
    %v1054 = vrot.slane %v1053, 4
    %v1055 = vmax.f32 %v1053, %v1054
    %v1056 = vrot.slane %v1055, 2
    %v1057 = vmax.f32 %v1055, %v1056
    %v1058 = vrot.slane %v1057, 1
    %v1059 = vmax.f32 %v1057, %v1058
    %v1060 = vmax.f32 %v1035, %v1037
    %v1061 = vrot.slane %v1060, 4
    %v1062 = vmax.f32 %v1060, %v1061
    %v1063 = vrot.slane %v1062, 2
    %v1064 = vmax.f32 %v1062, %v1063
    %v1065 = vrot.slane %v1064, 1
    %v1066 = vmax.f32 %v1064, %v1065
    // Predicated region
    $region62: #{stn3d_forward.1} parent=1 // pred_check
      %p1067 = pneg %p411
    $region63: #{stn3d_forward.1} parent=1 // pred_check_branch
      %1069 = sbr.rel (%p1067) target = $region65
    $region64: #{stn3d_forward.1} parent=1 // pred_region
      %v1074 = vrot.slane %v1052, 6
      %v1075 = vrot.slane %v1066, 6
      %vm1076 = vcmask 1041408
      %v1077 = vsel %vm1076, %v1045, %v1074
      %v1078 = vsel %vm1076, %v1059, %v1075
      %vm1079 = vcmask 1044484
      %v1080 = vsel %vm1079, %v1077, %v1077
      %vm1081 = vcmask 1046534
      %v1082 = vsel %vm1081, %v1077, %v1080
      %v1083 = vrot.slane %v1078, 7
      %vm1084 = vcmask 1041409
      %v1085 = vsel %vm1084, %v1083, %v1082
      %vm1086 = vcmask 1043459
      %v1087 = vsel %vm1086, %v1083, %v1085
      %vm1088 = vcmask 1045509
      %v1089 = vsel %vm1088, %v1083, %v1087
      %vm1090 = vcmask 1047559
      %v1091 = vsel %vm1090, %v1083, %v1089
      %1093 = vst [vmem:[%s6 + $0xc] sm:$0xf] %v1091
    $region65: #{stn3d_forward.1} parent=1 // pred_fallthru
      _
    // Predicated region
    $region66: #{stn3d_forward.1} parent=1 // pred_check
      %p1094 = pneg %p439
    $region67: #{stn3d_forward.1} parent=1 // pred_check_branch
      %1096 = sbr.rel (%p1094) target = $region69
    $region68: #{stn3d_forward.1} parent=1 // pred_region
      %v1097 = vld [vmem:[%s6 + $0xc] sm:$0xf]
      %v1102 = vrot.slane %v1052, 6
      %v1103 = vrot.slane %v1066, 6
      %vm1104 = vcmask 1041408
      %v1105 = vsel %vm1104, %v1045, %v1102
      %v1106 = vsel %vm1104, %v1059, %v1103
      %vm1107 = vcmask 1044484
      %v1108 = vsel %vm1107, %v1105, %v1105
      %vm1109 = vcmask 1046534
      %v1110 = vsel %vm1109, %v1105, %v1108
      %v1111 = vrot.slane %v1106, 7
      %vm1112 = vcmask 1041409
      %v1113 = vsel %vm1112, %v1111, %v1110
      %vm1114 = vcmask 1043459
      %v1115 = vsel %vm1114, %v1111, %v1113
      %vm1116 = vcmask 1045509
      %v1117 = vsel %vm1116, %v1111, %v1115
      %vm1118 = vcmask 1047559
      %v1119 = vsel %vm1118, %v1111, %v1117
      %v1121 = vmax.f32 %v1097, %v1119
      %1122 = vst [vmem:[%s6 + $0xc] sm:$0xf] %v1121
    $region69: #{stn3d_forward.1} parent=1 // pred_fallthru
      _
    // Predicated region
    $region70: #{stn3d_forward.1} parent=1 // pred_check
      _
    $region71: #{stn3d_forward.1} parent=1 // pred_check_branch
      %1124 = sbr.rel (0) target = $region73
    $region72: #{stn3d_forward.1} parent=1 // pred_region
      _
    $region73: #{stn3d_forward.1} parent=1 // pred_fallthru
      _
    // Predicated region
    $region74: #{stn3d_forward.1} parent=1 // pred_check
      _
    $region75: #{stn3d_forward.1} parent=1 // pred_check_branch
      %1126 = sbr.rel (0) target = $region77
    $region76: #{stn3d_forward.1} parent=1 // pred_region
      _
    $region77: #{stn3d_forward.1} parent=1 // pred_fallthru
      _
    %1127 = vsyncpa [#allocation3], 1
    %1128 = vsyncpa [#allocation5], 1

</llo_original>
